<compile_context>
chip_gen: v5e
topology: v5e:2x2
jax: 0.10.0
libtpu: 0.0.40
codegen_flags: <defaults>
</compile_context>

<pallas_src>
import functools

import jax
import jax.numpy as jnp
from jax import lax
from jax.experimental import pallas as pl
from jax.experimental.pallas import tpu as pltpu

_SUBLANE = 8
_LANE = 128
_N_SPLITS = 2          # leading "parallel" grid axis; keeps both v7x TCs busy


def _round_up(x, m):
    return ((x + m - 1) // m) * m


def _pick_block_rows_and_vmem_limit():
    """Generation-aware block sizing.

    Whole-block temporaries (diff/abs, plus iota+select on the ragged block)
    cost a few block-sizes of VMEM on top of the 2-input x 2-buffer pipeline,
    so the block is budgeted at roughly 1/8 of the scoped VMEM limit:
      * 128 MiB VMEM parts (v5e / v6e): 8192 rows = 4 MiB/block, 64 MiB limit.
      * 64 MiB per-TC VMEM (v7x):       4096 rows = 2 MiB/block, 32 MiB limit.
    """
    try:
        vmem_bytes = pltpu.get_tpu_info().vmem_capacity_bytes
    except Exception:  # be conservative if the query is unavailable
        vmem_bytes = 64 << 20
    if vmem_bytes >= (100 << 20):
        return 8192, 64 << 20
    return 4096, 32 << 20


def _l1_partial_kernel(p_ref, g_ref, o_ref, *, block_rows, blocks_per_split,
                       valid_rows):
    """Accumulate sum(|p - g|) of one (block_rows, 128) block into o_ref.

    o_ref's BlockSpec returns the same (split, 0, 0) block for every step of
    the reduction axis, so it stays resident in VMEM and acts as the
    accumulator (no scratch needed).
    """
    j = pl.program_id(1)

    @pl.when(j == 0)
    def _init():
        o_ref[...] = jnp.zeros_like(o_ref)

    # Nominal (unclamped) global block index.  The input index_map clamps the
    # DMA source, so over-the-end blocks just re-read valid data; the ragged
    # path below masks those rows out using the unclamped index.
    b = pl.program_id(0) * blocks_per_split + j

    p = p_ref[...].astype(jnp.float32)
    g = g_ref[...].astype(jnp.float32)

    # (block_rows, 128) -> (8, 128) with pure elementwise VPU adds
    # (leading-axis reduction over whole vregs); the cross-lane/sublane reduce
    # is deferred to the wrapper (done once on N_SPLITS*8*128 values).
    def _accumulate(d):
        o_ref[...] += jnp.sum(
            d.reshape(block_rows // _SUBLANE, _SUBLANE, _LANE), axis=0
        ).reshape(1, _SUBLANE, _LANE)

    is_full = (b + 1) * block_rows <= valid_rows

    @pl.when(is_full)
    def _full_block():
        # Hot path: no iota / compare / select — keeps the kernel HBM-bound.
        _accumulate(jnp.abs(p - g))

    @pl.when(jnp.logical_not(is_full))
    def _ragged_block():
        # Row-granularity mask (the wrapper guarantees every in-bounds row is
        # fully valid).  int32 row ids only overflow beyond ~2^31 rows
        # (~1 TiB of f32 per tensor), far beyond trajectory sizes.
        row_ids = b * block_rows + lax.broadcasted_iota(
            jnp.int32, (block_rows, _LANE), 0)
        # Keep the select (not multiply-by-mask): out-of-bounds rows may hold
        # garbage (possibly NaN/Inf) that a multiply would propagate.
        _accumulate(jnp.where(row_ids < valid_rows, jnp.abs(p - g), 0.0))


def _l1_abs_sum_2d(p2, g2, block_rows, vmem_limit_bytes):
    """Sum of |p2 - g2| for a (rows, 128) pair via a streaming Pallas kernel."""
    rows = p2.shape[0]
    n_blocks = pl.cdiv(rows, block_rows)
    blocks_per_split = pl.cdiv(n_blocks, _N_SPLITS)

    def in_index_map(s, j):
        b = s * blocks_per_split + j
        # Clamp the DMA source block; nominally-OOB blocks are masked in-kernel.
        return (jnp.minimum(b, n_blocks - 1), 0)

    kernel = functools.partial(
        _l1_partial_kernel,
        block_rows=block_rows,
        blocks_per_split=blocks_per_split,
        valid_rows=rows,
    )

    itemsize = jnp.dtype(p2.dtype).itemsize
    cost = pl.CostEstimate(
        flops=3 * rows * _LANE,            # sub + abs + accumulate per element
        transcendentals=0,
        bytes_accessed=2 * rows * _LANE * itemsize
        + _N_SPLITS * _SUBLANE * _LANE * 4,
    )

    partials = pl.pallas_call(
        kernel,
        out_shape=jax.ShapeDtypeStruct((_N_SPLITS, _SUBLANE, _LANE), jnp.float32),
        grid_spec=pltpu.PrefetchScalarGridSpec(
            num_scalar_prefetch=0,
            grid=(_N_SPLITS, blocks_per_split),
            in_specs=[
                pl.BlockSpec((block_rows, _LANE), in_index_map),
                pl.BlockSpec((block_rows, _LANE), in_index_map),
            ],
            out_specs=pl.BlockSpec((1, _SUBLANE, _LANE), lambda s, j: (s, 0, 0)),
        ),
        compiler_params=pltpu.CompilerParams(
            # TODO(synk): verify "parallel" fans the leading size-2 axis out
            # across both v7x TensorCores; if not, switch to pltpu.CORE_PARALLEL.
            dimension_semantics=("parallel", "arbitrary"),
            vmem_limit_bytes=vmem_limit_bytes,
        ),
        cost_estimate=cost,
    )(p2, g2)

    # Single final cross-lane reduce of the per-split (8, 128) partial slabs.
    return jnp.sum(partials)


def l1_trajectory_loss(predictions, ground_truth):
    """Scalar L1 (mean absolute error) between two (B, Seq_len, Point_dim) tensors.

    Matches torch.nn.functional.l1_loss(predictions, ground_truth) with the
    default 'mean' reduction.
    """
    assert predictions.shape == ground_truth.shape
    n = predictions.size
    assert n > 0

    p_flat = predictions.reshape(-1)
    g_flat = ground_truth.reshape(-1)

    # 128-aligned prefix goes through the Pallas kernel as a zero-copy
    # (rows, 128) view; the <128-element ragged tail is reduced in plain JAX.
    # This replaces the old full-array jnp.pad copy for misaligned sizes.
    # TODO(synk): a manual-DMA variant from a 1-D HBM ref could also avoid the
    # prefix-slice copy XLA may emit when a tail exists on very large inputs.
    prefix = (n // _LANE) * _LANE
    tail = n - prefix

    total = jnp.zeros((), jnp.float32)

    if prefix:
        rows = prefix // _LANE
        target_rows, vmem_limit = _pick_block_rows_and_vmem_limit()
        block_rows = min(target_rows, _round_up(rows, _SUBLANE))
        p2 = p_flat[:prefix].reshape(rows, _LANE)
        g2 = g_flat[:prefix].reshape(rows, _LANE)
        total = total + _l1_abs_sum_2d(p2, g2, block_rows, vmem_limit)

    if tail:
        pt = p_flat[prefix:].astype(jnp.float32)
        gt = g_flat[prefix:].astype(jnp.float32)
        total = total + jnp.sum(jnp.abs(pt - gt))

    return total / n


if __name__ == "__main__":
    key = jax.random.PRNGKey(0)
    k1, k2 = jax.random.split(key)

    # (B, Seq_len, Point_dim); 4*130*2 = 1040 elements exercises both the
    # Pallas (128-aligned prefix) path and the plain-JAX ragged-tail path.
    B, SEQ_LEN, POINT_DIM = 4, 130, 2
    predictions = jax.random.normal(k1, (B, SEQ_LEN, POINT_DIM), dtype=jnp.float32)
    ground_truth = jax.random.normal(k2, (B, SEQ_LEN, POINT_DIM), dtype=jnp.float32)

    loss = l1_trajectory_loss(predictions, ground_truth)
    loss = jax.block_until_ready(loss)

    # Reference check against plain-JAX mean-abs-error (same semantics as F.l1_loss).
    ref = jnp.mean(jnp.abs(predictions - ground_truth))
    assert jnp.allclose(loss, ref, rtol=1e-5, atol=1e-6), (loss, ref)

    print("KERNEL_OK")
</pallas_src>

<mosaic_0001>
module attributes {stable_mosaic.version = 11 : i64} {
  func.func @_l1_partial_kernel(%arg0: i32, %arg1: i32, %arg2: memref<8x128xf32, #tpu.memory_space<vmem>>, %arg3: memref<8x128xf32, #tpu.memory_space<vmem>>, %arg4: memref<1x8x128xf32, #tpu.memory_space<vmem>>) attributes {dimension_semantics = [#tpu.dimension_semantics<parallel>, #tpu.dimension_semantics<arbitrary>], iteration_bounds = array<i64: 2, 1>, scalar_prefetch = 0 : i64, scratch_operands = 0 : i64, tpu.core_type = #tpu.core_type<tc>, window_params = [{transform_indices = @transform_0, window_bounds = array<i64: 8, 128>}, {transform_indices = @transform_1, window_bounds = array<i64: 8, 128>}, {transform_indices = @transform_2, window_bounds = array<i64: 1, 8, 128>}]} {
    %c0_i32 = arith.constant 0 : i32
    %0 = arith.cmpi eq, %arg1, %c0_i32 : i32
    %1 = arith.extui %0 : i1 to i32
    %c0_i32_0 = arith.constant 0 : i32
    %2 = arith.cmpi ne, %1, %c0_i32_0 : i32
    scf.if %2 {
      %cst = arith.constant 0.000000e+00 : f32
      %15 = vector.broadcast %cst : f32 to vector<1x8x128xf32>
      %c0_8 = arith.constant 0 : index
      %c0_9 = arith.constant 0 : index
      %c0_10 = arith.constant 0 : index
      %16 = vector.load %arg4[%c0_8, %c0_9, %c0_10] : memref<1x8x128xf32, #tpu.memory_space<vmem>>, vector<1x8x128xf32>
      tpu.vector_store %arg4[%c0_8, %c0_9, %c0_10], %15 {strides = array<i32>} : memref<1x8x128xf32, #tpu.memory_space<vmem>>, vector<1x8x128xf32>,
    } else {
    }
    %c1_i32 = arith.constant 1 : i32
    %3 = arith.muli %arg0, %c1_i32 : i32
    %4 = arith.addi %3, %arg1 : i32
    %c0 = arith.constant 0 : index
    %c0_1 = arith.constant 0 : index
    %5 = vector.load %arg2[%c0, %c0_1] : memref<8x128xf32, #tpu.memory_space<vmem>>, vector<8x128xf32>
    %c0_2 = arith.constant 0 : index
    %c0_3 = arith.constant 0 : index
    %6 = vector.load %arg3[%c0_2, %c0_3] : memref<8x128xf32, #tpu.memory_space<vmem>>, vector<8x128xf32>
    %c1_i32_4 = arith.constant 1 : i32
    %7 = arith.addi %4, %c1_i32_4 : i32
    %c8_i32 = arith.constant 8 : i32
    %8 = arith.muli %7, %c8_i32 : i32
    %c8_i32_5 = arith.constant 8 : i32
    %9 = arith.cmpi sle, %8, %c8_i32_5 : i32
    %10 = arith.extui %9 : i1 to i32
    %c0_i32_6 = arith.constant 0 : i32
    %11 = arith.cmpi ne, %10, %c0_i32_6 : i32
    scf.if %11 {
      %15 = arith.subf %5, %6 : vector<8x128xf32>
      %16 = math.absf %15 : vector<8x128xf32>
      %c0_8 = arith.constant 0 : index
      %c0_9 = arith.constant 0 : index
      %c0_10 = arith.constant 0 : index
      %17 = vector.load %arg4[%c0_8, %c0_9, %c0_10] : memref<1x8x128xf32, #tpu.memory_space<vmem>>, vector<1x8x128xf32>
      %18 = vector.shape_cast %16 : vector<8x128xf32> to vector<1x8x128xf32>
      %cst = arith.constant dense<0.000000e+00> : vector<8x128xf32>
      %19 = vector.multi_reduction <add>, %18, %cst [0] : vector<1x8x128xf32> to vector<8x128xf32>
      %20 = vector.shape_cast %19 : vector<8x128xf32> to vector<1x8x128xf32>
      %21 = arith.addf %17, %20 : vector<1x8x128xf32>
      %c0_11 = arith.constant 0 : index
      %c0_12 = arith.constant 0 : index
      %c0_13 = arith.constant 0 : index
      %22 = vector.load %arg4[%c0_11, %c0_12, %c0_13] : memref<1x8x128xf32, #tpu.memory_space<vmem>>, vector<1x8x128xf32>
      tpu.vector_store %arg4[%c0_11, %c0_12, %c0_13], %21 {strides = array<i32>} : memref<1x8x128xf32, #tpu.memory_space<vmem>>, vector<1x8x128xf32>,
    } else {
    }
    %true = arith.constant true
    %12 = arith.xori %9, %true : i1
    %13 = arith.extui %12 : i1 to i32
    %c0_i32_7 = arith.constant 0 : i32
    %14 = arith.cmpi ne, %13, %c0_i32_7 : i32
    scf.if %14 {
      %c8_i32_8 = arith.constant 8 : i32
      %15 = arith.muli %4, %c8_i32_8 : i32
      %16 = tpu.iota {dimensions = array<i32: 0>} : vector<8x128xi32>
      %17 = vector.broadcast %15 : i32 to vector<8x128xi32>
      %18 = arith.addi %17, %16 : vector<8x128xi32>
      %c8_i32_9 = arith.constant 8 : i32
      %19 = vector.broadcast %c8_i32_9 : i32 to vector<8x128xi32>
      %20 = arith.cmpi slt, %18, %19 : vector<8x128xi32>
      %21 = arith.subf %5, %6 : vector<8x128xf32>
      %22 = math.absf %21 : vector<8x128xf32>
      %cst = arith.constant 0.000000e+00 : f32
      %23 = vector.broadcast %cst : f32 to vector<8x128xf32>
      %24 = arith.select %20, %22, %23 : vector<8x128xi1>, vector<8x128xf32>
      %c0_10 = arith.constant 0 : index
      %c0_11 = arith.constant 0 : index
      %c0_12 = arith.constant 0 : index
      %25 = vector.load %arg4[%c0_10, %c0_11, %c0_12] : memref<1x8x128xf32, #tpu.memory_space<vmem>>, vector<1x8x128xf32>
      %26 = vector.shape_cast %24 : vector<8x128xf32> to vector<1x8x128xf32>
      %cst_13 = arith.constant dense<0.000000e+00> : vector<8x128xf32>
      %27 = vector.multi_reduction <add>, %26, %cst_13 [0] : vector<1x8x128xf32> to vector<8x128xf32>
      %28 = vector.shape_cast %27 : vector<8x128xf32> to vector<1x8x128xf32>
      %29 = arith.addf %25, %28 : vector<1x8x128xf32>
      %c0_14 = arith.constant 0 : index
      %c0_15 = arith.constant 0 : index
      %c0_16 = arith.constant 0 : index
      %30 = vector.load %arg4[%c0_14, %c0_15, %c0_16] : memref<1x8x128xf32, #tpu.memory_space<vmem>>, vector<1x8x128xf32>
      tpu.vector_store %arg4[%c0_14, %c0_15, %c0_16], %29 {strides = array<i32>} : memref<1x8x128xf32, #tpu.memory_space<vmem>>, vector<1x8x128xf32>,
    } else {
    }
    return
  }
  func.func @transform_0(%arg0: i32, %arg1: i32) -> (i32, i32) {
    %c1_i32 = arith.constant 1 : i32
    %0 = arith.muli %arg0, %c1_i32 : i32
    %1 = arith.addi %0, %arg1 : i32
    %c0_i32 = arith.constant 0 : i32
    %2 = arith.minsi %1, %c0_i32 : i32
    %c0_i32_0 = arith.constant 0 : i32
    %c0_i32_1 = arith.constant 0 : i32
    return %2, %c0_i32_0 : i32, i32
  }
  func.func @transform_1(%arg0: i32, %arg1: i32) -> (i32, i32) {
    %c1_i32 = arith.constant 1 : i32
    %0 = arith.muli %arg0, %c1_i32 : i32
    %1 = arith.addi %0, %arg1 : i32
    %c0_i32 = arith.constant 0 : i32
    %2 = arith.minsi %1, %c0_i32 : i32
    %c0_i32_0 = arith.constant 0 : i32
    %c0_i32_1 = arith.constant 0 : i32
    return %2, %c0_i32_0 : i32, i32
  }
  func.func @transform_2(%arg0: i32, %arg1: i32) -> (i32, i32, i32) {
    %c0_i32 = arith.constant 0 : i32
    %c0_i32_0 = arith.constant 0 : i32
    %c0_i32_1 = arith.constant 0 : i32
    return %arg0, %c0_i32, %c0_i32_0 : i32, i32, i32
  }
}

</mosaic_0001>

<llo_original>
// kernel: tpu_custom_call.1
$region0: #{tpu_custom_call.1}
  #allocation0 [shape = 'u32[]', space=smem, size = 0x4, offset = 0x4, fixed_abs, tag = 'smem constant byte address 0x4 - core index']
  #allocation1 [shape = 'u32[72,128]{1,0:T(1,128)}', space=vmem, size = 0x9000, scoped, tag = 'internal scratch']
  %s0 = inlined_call_operand.hbm [shape: f32[8,128], index: 0, kind: input, shape index: {}]
  %s1 = inlined_call_operand.hbm [shape: f32[8,128], index: 1, kind: input, shape index: {}]
  %s2 = inlined_call_operand.hbm [shape: f32[2,8,128], index: 2, kind: output, shape index: {}]
  %s3 = sld [smem:[#allocation0]]
  $region61: #{tpu_custom_call.1} parent=0
    _
  %s5 = ssub.s32 1, %s3
  %s6 = scalar_select 0, %s5, %s3
  $region1: #{tpu_custom_call.1} parent=0
    #allocation2 [shape = 'u8[8192]{0}', space=vmem, size = 0x2000, scoped, tag = 'input window, operand 0']
    #allocation3 [shape = 's32[2]{0}', space=sflag, size = 0x8, scoped, tag = 'scoped memory for tpu_custom_call.1']
    #allocation4 [shape = 's32[2]{0}', space=sflag, size = 0x8, scoped, tag = 'scoped memory for tpu_custom_call.1']
    #allocation5 [shape = 'u8[8192]{0}', space=vmem, size = 0x2000, scoped, tag = 'input window, operand 1']
    #allocation6 [shape = 's32[2]{0}', space=sflag, size = 0x8, scoped, tag = 'scoped memory for tpu_custom_call.1']
    #allocation7 [shape = 'u8[8192]{0}', space=vmem, size = 0x2000, scoped, tag = 'output window, operand 0']
    %7 = vsyncpa [#allocation3], 0
    %s8 = scalar_lea.sflag [#allocation3], 1
    %9 = vsyncpa %s8, 0
    %10 = vsyncpa [#allocation6], 0
    %s11 = scalar_lea.sflag [#allocation6], 1
    %12 = vsyncpa %s11, 0
    %13 = vsyncpa [#allocation4], 0
    %s14 = scalar_lea.sflag [#allocation4], 1
    %15 = vsyncpa %s14, 0
    loop: start=0, step=1, limit=4
    $region2: #{tpu_custom_call.1} parent=1 // loop_pre_header
      _
    $region3: #{tpu_custom_call.1} parent=1 // loop_header
      %s17 = sphi 0, %s21
      %p18 = scmp.ge.s32.totalorder %s17, 4
      %s24 = sphi 0, %s36
      %s25 = sphi 0, %s32
      %s26 = sphi 0, %s24
      %s27 = sphi 0, %s25
      %s28 = sphi 0, %s26
      %s29 = sphi 0, %s27
      %s45 = sphi 0, %s47
      %s48 = sphi 0, %s45
      %s49 = sphi 0, %s48
      %s65 = sphi 0, %s49
      %s77 = sphi 0, %s79
      %s80 = sphi 0, %s77
      %s81 = sphi 0, %s80
      %s97 = sphi 0, %s81
      %s103 = sphi 0, %s105
      %s106 = sphi 0, %s103
      %s107 = sphi 0, %s106
      %s123 = sphi 0, %s107
    $region4: #{tpu_custom_call.1} parent=1 // loop_header_branch
      %20 = sbr.rel (%p18) target = $region8
    $region5: #{tpu_custom_call.1} parent=1 // loop_body
      %s22 = ssub.s32 %s17, 1
      %s23 = ssub.s32 %s17, 2
      %s30 = sadd.s32 1, %s25
      %p31 = scmp.ge.s32.totalorder %s30, 1
      %s32 = scalar_select %p31, 0, %s30
      %s33 = sadd.s32 1, %s24
      %s34 = scalar_select %p31, %s33, %s24
      %p35 = scmp.ge.s32.totalorder %s34, 2
      %s36 = scalar_select %p35, 0, %s34
      %s37 = sadd.s32 %s24, %s25
      %p38 = scmp.lt.s32.totalorder %s37, 0
      %s39 = scalar_select %p38, %s37, 0
      %s40 = sadd.s32 %s36, %s32
      %p41 = scmp.lt.s32.totalorder %s40, 0
      %s42 = scalar_select %p41, %s40, 0
      %s43 = ssub.s32 %s39, %s42
      %p44 = scmp.eq.s32.totalorder %s43, 0
      %s46 = sadd.s32 %s45, 1
      %s47 = scalar_select %p44, %s45, %s46
      %p50 = pneg %p44
      %p51 = scmp.eq.s32.totalorder %s17, 1
      %p52 = por %p50, %p51
      %p53 = scmp.ne.s32.totalorder %s45, %s48
      %p54 = scmp.eq.s32.totalorder %s17, 0
      %p55 = por %p53, %p54
      %p56 = scmp.ne.s32.totalorder %s45, %s48
      %p57 = scmp.eq.s32.totalorder %s22, 1
      %p58 = por %p56, %p57
      %p59 = scmp.ne.s32.totalorder %s48, %s49
      %p60 = scmp.eq.s32.totalorder %s22, 0
      %p61 = por %p59, %p60
      %p62 = scmp.ne.s32.totalorder %s48, %s49
      %p63 = scmp.eq.s32.totalorder %s23, 1
      %p64 = por %p62, %p63
      %p66 = scmp.ne.s32.totalorder %s49, %s65
      %p67 = scmp.eq.s32.totalorder %s23, 0
      %p68 = por %p66, %p67
      %s69 = sadd.s32 %s24, %s25
      %p70 = scmp.lt.s32.totalorder %s69, 0
      %s71 = scalar_select %p70, %s69, 0
      %s72 = sadd.s32 %s36, %s32
      %p73 = scmp.lt.s32.totalorder %s72, 0
      %s74 = scalar_select %p73, %s72, 0
      %s75 = ssub.s32 %s71, %s74
      %p76 = scmp.eq.s32.totalorder %s75, 0
      %s78 = sadd.s32 %s77, 1
      %s79 = scalar_select %p76, %s77, %s78
      %p82 = pneg %p76
      %p83 = scmp.eq.s32.totalorder %s17, 1
      %p84 = por %p82, %p83
      %p85 = scmp.ne.s32.totalorder %s77, %s80
      %p86 = scmp.eq.s32.totalorder %s17, 0
      %p87 = por %p85, %p86
      %p88 = scmp.ne.s32.totalorder %s77, %s80
      %p89 = scmp.eq.s32.totalorder %s22, 1
      %p90 = por %p88, %p89
      %p91 = scmp.ne.s32.totalorder %s80, %s81
      %p92 = scmp.eq.s32.totalorder %s22, 0
      %p93 = por %p91, %p92
      %p94 = scmp.ne.s32.totalorder %s80, %s81
      %p95 = scmp.eq.s32.totalorder %s23, 1
      %p96 = por %p94, %p95
      %p98 = scmp.ne.s32.totalorder %s81, %s97
      %p99 = scmp.eq.s32.totalorder %s23, 0
      %p100 = por %p98, %p99
      %s101 = ssub.s32 %s24, %s36
      %p102 = scmp.eq.s32.totalorder %s101, 0
      %s104 = sadd.s32 %s103, 1
      %s105 = scalar_select %p102, %s103, %s104
      %p108 = pneg %p102
      %p109 = scmp.eq.s32.totalorder %s17, 1
      %p110 = por %p108, %p109
      %p111 = scmp.ne.s32.totalorder %s103, %s106
      %p112 = scmp.eq.s32.totalorder %s17, 0
      %p113 = por %p111, %p112
      %p114 = scmp.ne.s32.totalorder %s103, %s106
      %p115 = scmp.eq.s32.totalorder %s22, 1
      %p116 = por %p114, %p115
      %p117 = scmp.ne.s32.totalorder %s106, %s107
      %p118 = scmp.eq.s32.totalorder %s22, 0
      %p119 = por %p117, %p118
      %p120 = scmp.ne.s32.totalorder %s106, %s107
      %p121 = scmp.eq.s32.totalorder %s23, 1
      %p122 = por %p120, %p121
      %p124 = scmp.ne.s32.totalorder %s107, %s123
      %p125 = scmp.eq.s32.totalorder %s23, 0
      %p126 = por %p124, %p125
      %p127 = scmp.le.s32.totalorder 1, %s17
      %p128 = scmp.lt.s32.totalorder %s17, 3
      %p129 = pnand %p127, %p128
      %p130 = pneg %p129
      // Predicated region
      $region9: #{tpu_custom_call.1} parent=5 // pred_check
        _
      $region10: #{tpu_custom_call.1} parent=5 // pred_check_branch
        %132 = sbr.rel (%p129) target = $region12
      $region11: #{tpu_custom_call.1} parent=5 // pred_region
        %s133 = ssub.s32 %s17, 1
      $region12: #{tpu_custom_call.1} parent=5 // pred_fallthru
        _
      %p134 = scmp.lt.s32.totalorder %s17, 2
      // Predicated region
      $region13: #{tpu_custom_call.1} parent=5 // pred_check
        %p135 = pneg %p134
      $region14: #{tpu_custom_call.1} parent=5 // pred_check_branch
        %137 = sbr.rel (%p135) target = $region16
      $region15: #{tpu_custom_call.1} parent=5 // pred_region
        // Predicated region
        $region17: #{tpu_custom_call.1} parent=15 // pred_check
          %p138 = pneg %p55
        $region18: #{tpu_custom_call.1} parent=15 // pred_check_branch
          %140 = sbr.rel (%p138) target = $region20
        $region19: #{tpu_custom_call.1} parent=15 // pred_region
          %s141 = sand.u32 %s45, 1
          %s142 = scalar_lea.sflag [#allocation3], %s141
          %s143 = sand.u32 %s45, 1
          %s144 = smul.addr %s143, 8
          %s145 = scalar_lea.vmem [#allocation2], %s144
          %s146 = sadd.s32 %s24, %s25
          %p147 = scmp.lt.s32.totalorder %s146, 0
          %s148 = scalar_select %p147, %s146, 0
          %150 = vsyncadd %s142, 0
          %s151 = smul.addr %s148, 8
          %s152 = scalar_lea.hbm %s0, %s151
          %s154 = sshll.u32 %s152, 4
          %s155 = int_to_ptr.hbm [resolvable:$true] %s154
          %s156 = sshll.u32 %s145, 4
          %s157 = int_to_ptr.vmem [resolvable:$true] %s156
          %159 = dma.hbm_to_vmem [thread:$0]  %s155, 128, %s157, %s142
        $region20: #{tpu_custom_call.1} parent=15 // pred_fallthru
          _
        // Predicated region
        $region21: #{tpu_custom_call.1} parent=15 // pred_check
          %p160 = pneg %p87
        $region22: #{tpu_custom_call.1} parent=15 // pred_check_branch
          %162 = sbr.rel (%p160) target = $region24
        $region23: #{tpu_custom_call.1} parent=15 // pred_region
          %s163 = sand.u32 %s77, 1
          %s164 = scalar_lea.sflag [#allocation6], %s163
          %s165 = sand.u32 %s77, 1
          %s166 = smul.addr %s165, 8
          %s167 = scalar_lea.vmem [#allocation5], %s166
          %s168 = sadd.s32 %s24, %s25
          %p169 = scmp.lt.s32.totalorder %s168, 0
          %s170 = scalar_select %p169, %s168, 0
          %172 = vsyncadd %s164, 0
          %s173 = smul.addr %s170, 8
          %s174 = scalar_lea.hbm %s1, %s173
          %s176 = sshll.u32 %s174, 4
          %s177 = int_to_ptr.hbm [resolvable:$true] %s176
          %s178 = sshll.u32 %s167, 4
          %s179 = int_to_ptr.vmem [resolvable:$true] %s178
          %181 = dma.hbm_to_vmem [thread:$0]  %s177, 128, %s179, %s164
        $region24: #{tpu_custom_call.1} parent=15 // pred_fallthru
          _
      $region16: #{tpu_custom_call.1} parent=5 // pred_fallthru
        _
      %p182 = scmp.le.s32.totalorder 1, %s17
      %p183 = scmp.lt.s32.totalorder %s17, 3
      %p184 = pnand %p182, %p183
      %p185 = pneg %p184
      // Predicated region
      $region25: #{tpu_custom_call.1} parent=5 // pred_check
        _
      $region26: #{tpu_custom_call.1} parent=5 // pred_check_branch
        %187 = sbr.rel (%p184) target = $region28
      $region27: #{tpu_custom_call.1} parent=5 // pred_region
        %s188 = ssub.s32 %s17, 1
        %s189 = sand.u32 %s48, 1
        %s190 = scalar_lea.sflag [#allocation3], %s189
        %s191 = sand.u32 %s48, 1
        %s192 = smul.addr %s191, 8
        %s193 = scalar_lea.vmem [#allocation2], %s192
        // Predicated region
        $region29: #{tpu_custom_call.1} parent=27 // pred_check
          %p194 = pneg %p61
        $region30: #{tpu_custom_call.1} parent=27 // pred_check_branch
          %196 = sbr.rel (%p194) target = $region32
        $region31: #{tpu_custom_call.1} parent=27 // pred_region
          %198 = dma.done %s190, 128
        $region32: #{tpu_custom_call.1} parent=27 // pred_fallthru
          _
        %s199 = sand.u32 %s80, 1
        %s200 = scalar_lea.sflag [#allocation6], %s199
        %s201 = sand.u32 %s80, 1
        %s202 = smul.addr %s201, 8
        %s203 = scalar_lea.vmem [#allocation5], %s202
        // Predicated region
        $region33: #{tpu_custom_call.1} parent=27 // pred_check
          %p204 = pneg %p93
        $region34: #{tpu_custom_call.1} parent=27 // pred_check_branch
          %206 = sbr.rel (%p204) target = $region36
        $region35: #{tpu_custom_call.1} parent=27 // pred_region
          %208 = dma.done %s200, 128
        $region36: #{tpu_custom_call.1} parent=27 // pred_fallthru
          _
        %s209 = sand.u32 %s48, 1
        %s210 = scalar_lea.sflag [#allocation3], %s209
        %s211 = sand.u32 %s48, 1
        %s212 = smul.addr %s211, 8
        %s213 = scalar_lea.vmem [#allocation2], %s212
        %p214 = pneg %p61
        %p215 = pneg %p58
        %s216 = sand.u32 %s80, 1
        %s217 = scalar_lea.sflag [#allocation6], %s216
        %s218 = sand.u32 %s80, 1
        %s219 = smul.addr %s218, 8
        %s220 = scalar_lea.vmem [#allocation5], %s219
        %p221 = pneg %p93
        %p222 = pneg %p90
        %p223 = pneg %p119
        %p224 = pneg %p116
        %s225 = sand.u32 %s106, 1
        %s226 = scalar_lea.sflag [#allocation4], %s225
        %s227 = sand.u32 %s106, 1
        %s228 = smul.addr %s227, 8
        %s229 = scalar_lea.vmem [#allocation7], %s228
        %s230 = sadd.s32 %s26, %s27
        %p231 = scmp.lt.s32.totalorder %s230, 0
        %s232 = scalar_select %p231, %s230, 0
        %s233 = sadd.s32 %s26, %s27
        %p234 = scmp.lt.s32.totalorder %s233, 0
        %s235 = scalar_select %p234, %s233, 0
        %p236 = scmp.eq.s32.totalorder %s27, 0
        // Predicated region
        $region37: #{tpu_custom_call.1} parent=27 // pred_check
          %p237 = pneg %p236
        $region38: #{tpu_custom_call.1} parent=27 // pred_check_branch
          %239 = sbr.rel (%p237) target = $region40
        $region39: #{tpu_custom_call.1} parent=27 // pred_region
          %240 = vst [vmem:[%s229] sm:$0xff] 0.0
        $region40: #{tpu_custom_call.1} parent=27 // pred_fallthru
          _
        %s241 = sadd.s32 %s26, %s27
        %v242 = vld [vmem:[%s193] sm:$0xff]
        %v243 = vld [vmem:[%s203] sm:$0xff]
        %s244 = sadd.s32 %s241, 1
        %s245 = smul.u32 %s244, 8
        %p246 = scmp.le.s32.totalorder %s245, 8
        // Predicated region
        $region41: #{tpu_custom_call.1} parent=27 // pred_check
          %p247 = pneg %p246
        $region42: #{tpu_custom_call.1} parent=27 // pred_check_branch
          %249 = sbr.rel (%p247) target = $region44
        $region43: #{tpu_custom_call.1} parent=27 // pred_region
          %v250 = vsub.f32 %v242, %v243
          %v251 = vand.u32 2147483647, %v250
          %v252 = vld [vmem:[%s229] sm:$0xff]
          %v253 = vadd.f32 %v251, 0.0
          %v254 = vadd.f32 %v252, %v253
          %255 = vst [vmem:[%s229] sm:$0xff] %v254
        $region44: #{tpu_custom_call.1} parent=27 // pred_fallthru
          _
        %p256 = scmp.gt.s32.totalorder %s245, 8
        // Predicated region
        $region45: #{tpu_custom_call.1} parent=27 // pred_check
          %p257 = pneg %p256
        $region46: #{tpu_custom_call.1} parent=27 // pred_check_branch
          %259 = sbr.rel (%p257) target = $region48
        $region47: #{tpu_custom_call.1} parent=27 // pred_region
          %s260 = smul.u32 %s241, 8
          %v261 = vlaneseq
          %v262 = vshrl.u32 %v261, 7
          %v263 = vstv %s260
          %v264 = vadd.s32 %v263, %v262
          %vm265 = vcmp.lt.s32.totalorder %v264, 8
          %v266 = vsub.f32 %v242, %v243
          %v267 = vand.u32 2147483647, %v266
          %v268 = vsel %vm265, %v267, 0.0
          %v269 = vld [vmem:[%s229] sm:$0xff]
          %v270 = vadd.f32 %v268, 0.0
          %v271 = vadd.f32 %v269, %v270
          %272 = vst [vmem:[%s229] sm:$0xff] %v271
        $region48: #{tpu_custom_call.1} parent=27 // pred_fallthru
          _
        %s273 = sand.u32 %s106, 1
        %s274 = scalar_lea.sflag [#allocation4], %s273
        %s275 = sand.u32 %s106, 1
        %s276 = smul.addr %s275, 8
        %s277 = scalar_lea.vmem [#allocation7], %s276
        // Predicated region
        $region49: #{tpu_custom_call.1} parent=27 // pred_check
          %p278 = pneg %p116
        $region50: #{tpu_custom_call.1} parent=27 // pred_check_branch
          %280 = sbr.rel (%p278) target = $region52
        $region51: #{tpu_custom_call.1} parent=27 // pred_region
          %282 = vsyncadd %s274, 0
          %s283 = smul.addr %s26, 8
          %s284 = scalar_lea.hbm %s2, %s283
          %s286 = sshll.u32 %s277, 4
          %s287 = int_to_ptr.vmem [resolvable:$true] %s286
          %s288 = sshll.u32 %s284, 4
          %s289 = int_to_ptr.hbm [resolvable:$true] %s288
          %291 = dma.vmem_to_hbm [thread:$0]  %s287, 128, %s289, %s274
        $region52: #{tpu_custom_call.1} parent=27 // pred_fallthru
          _
      $region28: #{tpu_custom_call.1} parent=5 // pred_fallthru
        _
      %p292 = scmp.le.s32.totalorder 2, %s17
      // Predicated region
      $region53: #{tpu_custom_call.1} parent=5 // pred_check
        %p293 = pneg %p292
      $region54: #{tpu_custom_call.1} parent=5 // pred_check_branch
        %295 = sbr.rel (%p293) target = $region56
      $region55: #{tpu_custom_call.1} parent=5 // pred_region
        %s296 = ssub.s32 %s17, 2
        // Predicated region
        $region57: #{tpu_custom_call.1} parent=55 // pred_check
          %p297 = pneg %p122
        $region58: #{tpu_custom_call.1} parent=55 // pred_check_branch
          %299 = sbr.rel (%p297) target = $region60
        $region59: #{tpu_custom_call.1} parent=55 // pred_region
          %s300 = sand.u32 %s107, 1
          %s301 = scalar_lea.sflag [#allocation4], %s300
          %s302 = sand.u32 %s107, 1
          %s303 = smul.addr %s302, 8
          %s304 = scalar_lea.vmem [#allocation7], %s303
          %306 = dma.done %s301, 128
        $region60: #{tpu_custom_call.1} parent=55 // pred_fallthru
          _
      $region56: #{tpu_custom_call.1} parent=5 // pred_fallthru
        _
    $region6: #{tpu_custom_call.1} parent=1 // loop_footer
      %s21 = sadd.s32 1, %s17
    $region7: #{tpu_custom_call.1} parent=1 // loop_footer_branch
      %16 = sbr.rel target = $region3
    $region8: #{tpu_custom_call.1} parent=1 // loop_exit
      _
    %307 = vsyncpa [#allocation3], 1
    %s308 = scalar_lea.sflag [#allocation3], 1
    %309 = vsyncpa %s308, 1
    %310 = vsyncpa [#allocation6], 1
    %s311 = scalar_lea.sflag [#allocation6], 1
    %312 = vsyncpa %s311, 1
    %313 = vsyncpa [#allocation4], 1
    %s314 = scalar_lea.sflag [#allocation4], 1
    %315 = vsyncpa %s314, 1

</llo_original>
